<compile_context>
chip_gen: v6e
topology: v6e:2x2x1
jax: 0.10.0
libtpu: 0.0.40
codegen_flags: <defaults>
</compile_context>

<pallas_src>
import math

import jax
import jax.numpy as jnp
from jax.experimental import pallas as pl
from jax.experimental.pallas import tpu as pltpu

MIN_NORM = 1e-5
ATANH_EPS = 1e-5


def _make_logmap0_kernel_column(c):
    """logmap0 kernel for arbitrary D: per-row (TILE, 1) scale column."""
    c = float(c)
    sqrt_c = math.sqrt(c)
    inv_sqrt_c = 1.0 / sqrt_c

    def kernel(x_ref, o_ref):
        # x_ref/o_ref: (TILE, D) tiles in VMEM.
        x = x_ref[...].astype(jnp.float32)

        # Squared norm over the last (ball) dimension; clamping sq >= MIN_NORM^2
        # is equivalent to torch's .clamp_min(1e-5) on the norm.
        sq = jnp.sum(x * x, axis=-1, keepdims=True)          # (TILE, 1)
        sq = jnp.maximum(sq, MIN_NORM * MIN_NORM)

        # rsqrt instead of sqrt + divide (one fewer EUP op on the column).
        inv_norm = jax.lax.rsqrt(sq)
        norm = sq * inv_norm

        # artanh with hyptorch-style clamping (lower bound is dead: arg >= 0).
        arg = jnp.minimum(sqrt_c * norm, 1.0 - ATANH_EPS)
        atanh = 0.5 * jnp.log((1.0 + arg) / (1.0 - arg))

        scale = atanh * inv_sqrt_c * inv_norm                # (TILE, 1)

        # One VPU multiply per element on the full tile.
        o_ref[...] = (x * scale).astype(o_ref.dtype)

    return kernel


def _make_logmap0_kernel_packed(c, d, pack):
    """logmap0 kernel for lane-packed rows: each 128-lane physical row holds
    `pack` logical rows of length `d`.  The per-segment squared norm is computed
    lane-dense with a block-diagonal ones matmul on the (otherwise idle) MXU."""
    c = float(c)
    sqrt_c = math.sqrt(c)
    inv_sqrt_c = 1.0 / sqrt_c
    w = d * pack  # = 128

    def kernel(x_ref, o_ref):
        x = x_ref[...].astype(jnp.float32)                   # (TILE, 128)
        xsq = x * x

        # Block-diagonal (w, w) ones: blk[l, m] = 1 iff l and m are in the same
        # length-d segment.  xsq @ blk puts each segment's squared norm in every
        # lane of that segment (lane-dense, no XLU reduce, no lane broadcast).
        r = jax.lax.broadcasted_iota(jnp.int32, (w, w), 0) // d
        col = jax.lax.broadcasted_iota(jnp.int32, (w, w), 1) // d
        blk = (r == col).astype(jnp.float32)
        sq = jnp.dot(xsq, blk, preferred_element_type=jnp.float32)

        sq = jnp.maximum(sq, MIN_NORM * MIN_NORM)
        inv_norm = jax.lax.rsqrt(sq)
        norm = sq * inv_norm
        arg = jnp.minimum(sqrt_c * norm, 1.0 - ATANH_EPS)
        atanh = 0.5 * jnp.log((1.0 + arg) / (1.0 - arg))
        scale = atanh * inv_sqrt_c * inv_norm                # (TILE, 128)

        o_ref[...] = (x * scale).astype(o_ref.dtype)

    return kernel


def from_poincare(x, c, *, target_bytes=2 << 20):
    """FromPoincare forward: maps points in the Poincare ball to Euclidean space.

    x: (N, D) array (D = ball_dim on the lane axis). c: static curvature (float).
    """
    N, D = x.shape
    itemsize = jnp.dtype(x.dtype).itemsize
    # dtype-dependent minimum sublane multiple (f32: 8, bf16: 16, int8/fp8: 32).
    sub = {4: 8, 2: 16, 1: 32}.get(itemsize, 8)

    # Lane-packing for narrow ball dims: (N, D) -> (N/p, 128) is a free reshape
    # when N % p == 0 (row-major contiguous), and makes loads/stores lane-dense.
    pack = 128 // D if (D < 128 and 128 % D == 0) else 1
    if pack > 1 and N % pack == 0:
        M, W = N // pack, D * pack
        x_view = x.reshape(M, W)
        kernel = _make_logmap0_kernel_packed(c, D, pack)
        flops = 3 * N * D + 2 * M * W * W
    else:
        M, W = N, D
        x_view = x
        kernel = _make_logmap0_kernel_column(c)
        flops = 3 * N * D

    # Tile rows: byte-targeted (~target_bytes per input buffer), rounded to the
    # sublane multiple, capped so there are >= 2 grid steps when M permits
    # (megacore sharding on v7x).  When the target covers all rows, use a single
    # full-extent block (legal for any M, no padding at all).
    tgt = max(sub, (target_bytes // (itemsize * W)) // sub * sub)
    if M >= 2 * sub:
        half = ((pl.cdiv(M, 2) + sub - 1) // sub) * sub
        tgt = min(tgt, half)
    tile_m = M if tgt >= M else tgt
    grid = (pl.cdiv(M, tile_m),)

    out = pl.pallas_call(
        kernel,
        out_shape=jax.ShapeDtypeStruct((M, W), x.dtype),
        grid_spec=pl.GridSpec(
            grid=grid,
            in_specs=[pl.BlockSpec((tile_m, W), lambda i: (i, 0))],
            out_specs=pl.BlockSpec((tile_m, W), lambda i: (i, 0)),
        ),
        compiler_params=pltpu.CompilerParams(
            dimension_semantics=("parallel",)),
        cost_estimate=pl.CostEstimate(
            flops=int(flops),
            transcendentals=int(4 * N),
            bytes_accessed=int(2 * N * D * itemsize)),
    )(x_view)

    if out.shape != (N, D):
        out = out.reshape(N, D)  # free (inverse of the packing reshape)
    return out


def from_poincare_ref(x, c):
    """Pure-JAX reference mirroring hyptorch pmath.logmap0 exactly."""
    sqrt_c = jnp.sqrt(jnp.float32(c))
    norm = jnp.maximum(jnp.linalg.norm(x, axis=-1, keepdims=True), MIN_NORM)
    arg = jnp.clip(sqrt_c * norm, -1.0 + ATANH_EPS, 1.0 - ATANH_EPS)
    atanh = 0.5 * (jnp.log1p(arg) - jnp.log1p(-arg))
    return x / norm / sqrt_c * atanh


def _check(out, ref):
    assert out.shape == ref.shape
    assert jnp.allclose(out, ref, atol=1e-5, rtol=1e-4), (
        float(jnp.max(jnp.abs(out - ref))))


if __name__ == "__main__":
    key = jax.random.PRNGKey(0)
    c = 1.0  # curvature (train_c=False -> plain float)

    # 1) Primary case: batch of 16 points in a 128-dim Poincare ball
    #    (column kernel, 2 grid steps).
    N, D = 16, 128
    x = 0.3 * jax.random.normal(key, (N, D), dtype=jnp.float32)
    x = x / (1.0 + jnp.linalg.norm(x, axis=-1, keepdims=True))
    out = jax.block_until_ready(from_poincare(x, c))
    _check(out, from_poincare_ref(x, c))

    # 2) Ragged odd batch + narrow ball_dim (column kernel, single full-extent
    #    block, no padding, no wrapper pad/slice).
    N2, D2 = 13, 64
    x2 = 0.2 * jax.random.normal(jax.random.PRNGKey(0), (N2, D2), jnp.float32)
    x2 = x2 / (1.0 + jnp.linalg.norm(x2, axis=-1, keepdims=True))
    out2 = jax.block_until_ready(from_poincare(x2, c))
    _check(out2, from_poincare_ref(x2, c))

    # 3) Narrow ball_dim with even batch -> lane-packed kernel (free reshape to
    #    (256, 128), block-diagonal MXU reduce, lane-dense stores).
    N3, D3 = 512, 64
    x3 = 0.2 * jax.random.normal(jax.random.PRNGKey(0), (N3, D3), jnp.float32)
    x3 = x3 / (1.0 + jnp.linalg.norm(x3, axis=-1, keepdims=True))
    out3 = jax.block_until_ready(from_poincare(x3, c))
    _check(out3, from_poincare_ref(x3, c))

    # 4) Tile-unaligned batch -> partial last block (OOB reads discarded rows,
    #    OOB writes dropped), exercises the no-pad ragged path at D=128.
    N4, D4 = 20, 128
    x4 = 0.3 * jax.random.normal(jax.random.PRNGKey(0), (N4, D4), jnp.float32)
    x4 = x4 / (1.0 + jnp.linalg.norm(x4, axis=-1, keepdims=True))
    out4 = jax.block_until_ready(from_poincare(x4, c))
    _check(out4, from_poincare_ref(x4, c))

    print("KERNEL_OK")
</pallas_src>

<mosaic_0001>
module attributes {stable_mosaic.version = 11 : i64} {
  func.func @kernel(%arg0: i32, %arg1: memref<8x128xf32, #tpu.memory_space<vmem>>, %arg2: memref<8x128xf32, #tpu.memory_space<vmem>>) attributes {dimension_semantics = [#tpu.dimension_semantics<parallel>], iteration_bounds = array<i64: 2>, scalar_prefetch = 0 : i64, scratch_operands = 0 : i64, tpu.core_type = #tpu.core_type<tc>, window_params = [{transform_indices = @transform_0, window_bounds = array<i64: 8, 128>}, {transform_indices = @transform_1, window_bounds = array<i64: 8, 128>}]} {
    %c0 = arith.constant 0 : index
    %c0_0 = arith.constant 0 : index
    %0 = vector.load %arg1[%c0, %c0_0] : memref<8x128xf32, #tpu.memory_space<vmem>>, vector<8x128xf32>
    %1 = arith.mulf %0, %0 : vector<8x128xf32>
    %cst = arith.constant dense<0.000000e+00> : vector<8xf32>
    %2 = vector.multi_reduction <add>, %1, %cst [1] : vector<8x128xf32> to vector<8xf32>
    %3 = vector.shape_cast %2 : vector<8xf32> to vector<8x1xf32>
    %cst_1 = arith.constant 1.000000e-10 : f32
    %4 = vector.broadcast %cst_1 : f32 to vector<8x1xf32>
    %5 = arith.maximumf %3, %4 : vector<8x1xf32>
    %6 = math.rsqrt %5 : vector<8x1xf32>
    %7 = arith.mulf %5, %6 : vector<8x1xf32>
    %cst_2 = arith.constant 1.000000e+00 : f32
    %8 = vector.broadcast %cst_2 : f32 to vector<8x1xf32>
    %9 = arith.mulf %8, %7 : vector<8x1xf32>
    %cst_3 = arith.constant 0.999989986 : f32
    %10 = vector.broadcast %cst_3 : f32 to vector<8x1xf32>
    %11 = arith.minimumf %9, %10 : vector<8x1xf32>
    %cst_4 = arith.constant 1.000000e+00 : f32
    %12 = vector.broadcast %cst_4 : f32 to vector<8x1xf32>
    %13 = arith.addf %12, %11 : vector<8x1xf32>
    %cst_5 = arith.constant 1.000000e+00 : f32
    %14 = vector.broadcast %cst_5 : f32 to vector<8x1xf32>
    %15 = arith.subf %14, %11 : vector<8x1xf32>
    %16 = arith.divf %13, %15 : vector<8x1xf32>
    %17 = math.log %16 : vector<8x1xf32>
    %cst_6 = arith.constant 5.000000e-01 : f32
    %18 = vector.broadcast %cst_6 : f32 to vector<8x1xf32>
    %19 = arith.mulf %18, %17 : vector<8x1xf32>
    %cst_7 = arith.constant 1.000000e+00 : f32
    %20 = vector.broadcast %cst_7 : f32 to vector<8x1xf32>
    %21 = arith.mulf %19, %20 : vector<8x1xf32>
    %22 = arith.mulf %21, %6 : vector<8x1xf32>
    %23 = vector.broadcast %22 : vector<8x1xf32> to vector<8x128xf32>
    %24 = arith.mulf %0, %23 : vector<8x128xf32>
    %c0_8 = arith.constant 0 : index
    %c0_9 = arith.constant 0 : index
    %25 = vector.load %arg2[%c0_8, %c0_9] : memref<8x128xf32, #tpu.memory_space<vmem>>, vector<8x128xf32>
    tpu.vector_store %arg2[%c0_8, %c0_9], %24 {strides = array<i32>} : memref<8x128xf32, #tpu.memory_space<vmem>>, vector<8x128xf32>,
    return
  }
  func.func @transform_0(%arg0: i32) -> (i32, i32) {
    %c0_i32 = arith.constant 0 : i32
    %c0_i32_0 = arith.constant 0 : i32
    return %arg0, %c0_i32 : i32, i32
  }
  func.func @transform_1(%arg0: i32) -> (i32, i32) {
    %c0_i32 = arith.constant 0 : i32
    %c0_i32_0 = arith.constant 0 : i32
    return %arg0, %c0_i32 : i32, i32
  }
}

</mosaic_0001>

<llo_original>
// kernel: tpu_custom_call.1
$region0: #{tpu_custom_call.1}
  #allocation0 [shape = 'u32[]', space=smem, size = 0x4, offset = 0x4, fixed_abs, tag = 'smem constant byte address 0x4 - core index']
  #allocation1 [shape = 'u32[144,128]{1,0:T(1,128)}', space=vmem, size = 0x12000, scoped, tag = 'internal scratch']
  %s0 = inlined_call_operand.hbm [shape: f32[16,128], index: 0, kind: input, shape index: {}]
  %s1 = inlined_call_operand.hbm [shape: f32[16,128], index: 1, kind: output, shape index: {}]
  %s2 = sld [smem:[#allocation0]]
  $region41: #{tpu_custom_call.1} parent=0
    _
  %s4 = ssub.s32 1, %s2
  %s5 = scalar_select 0, %s4, %s2
  $region1: #{tpu_custom_call.1} parent=0
    #allocation2 [shape = 'u8[8192]{0}', space=vmem, size = 0x2000, scoped, tag = 'input window, operand 0']
    #allocation3 [shape = 's32[2]{0}', space=sflag, size = 0x8, scoped, tag = 'scoped memory for tpu_custom_call.1']
    #allocation4 [shape = 's32[2]{0}', space=sflag, size = 0x8, scoped, tag = 'scoped memory for tpu_custom_call.1']
    #allocation5 [shape = 'u8[8192]{0}', space=vmem, size = 0x2000, scoped, tag = 'output window, operand 0']
    %6 = vsyncpa [#allocation3], 0
    %s7 = scalar_lea.sflag [#allocation3], 1
    %8 = vsyncpa %s7, 0
    %9 = vsyncpa [#allocation4], 0
    %s10 = scalar_lea.sflag [#allocation4], 1
    %11 = vsyncpa %s10, 0
    loop: start=0, step=1, limit=4
    $region2: #{tpu_custom_call.1} parent=1 // loop_pre_header
      _
    $region3: #{tpu_custom_call.1} parent=1 // loop_header
      %s13 = sphi 0, %s17
      %p14 = scmp.ge.s32.totalorder %s13, 4
      %s23 = sphi 0, %s25
      %s26 = sphi 0, %s23
      %s27 = sphi 0, %s26
      %s43 = sphi 0, %s27
      %s49 = sphi 0, %s51
      %s52 = sphi 0, %s49
      %s53 = sphi 0, %s52
      %s69 = sphi 0, %s53
    $region4: #{tpu_custom_call.1} parent=1 // loop_header_branch
      %16 = sbr.rel (%p14) target = $region8
    $region5: #{tpu_custom_call.1} parent=1 // loop_body
      %s18 = ssub.s32 %s13, 1
      %s19 = ssub.s32 %s13, 2
      %s20 = sadd.s32 %s13, 1
      %s21 = ssub.s32 %s13, %s20
      %p22 = scmp.eq.s32.totalorder %s21, 0
      %s24 = sadd.s32 %s23, 1
      %s25 = scalar_select %p22, %s23, %s24
      %p28 = pneg %p22
      %p29 = scmp.eq.s32.totalorder %s13, 1
      %p30 = por %p28, %p29
      %p31 = scmp.ne.s32.totalorder %s23, %s26
      %p32 = scmp.eq.s32.totalorder %s13, 0
      %p33 = por %p31, %p32
      %p34 = scmp.ne.s32.totalorder %s23, %s26
      %p35 = scmp.eq.s32.totalorder %s18, 1
      %p36 = por %p34, %p35
      %p37 = scmp.ne.s32.totalorder %s26, %s27
      %p38 = scmp.eq.s32.totalorder %s18, 0
      %p39 = por %p37, %p38
      %p40 = scmp.ne.s32.totalorder %s26, %s27
      %p41 = scmp.eq.s32.totalorder %s19, 1
      %p42 = por %p40, %p41
      %p44 = scmp.ne.s32.totalorder %s27, %s43
      %p45 = scmp.eq.s32.totalorder %s19, 0
      %p46 = por %p44, %p45
      %s47 = ssub.s32 %s13, %s20
      %p48 = scmp.eq.s32.totalorder %s47, 0
      %s50 = sadd.s32 %s49, 1
      %s51 = scalar_select %p48, %s49, %s50
      %p54 = pneg %p48
      %p55 = scmp.eq.s32.totalorder %s13, 1
      %p56 = por %p54, %p55
      %p57 = scmp.ne.s32.totalorder %s49, %s52
      %p58 = scmp.eq.s32.totalorder %s13, 0
      %p59 = por %p57, %p58
      %p60 = scmp.ne.s32.totalorder %s49, %s52
      %p61 = scmp.eq.s32.totalorder %s18, 1
      %p62 = por %p60, %p61
      %p63 = scmp.ne.s32.totalorder %s52, %s53
      %p64 = scmp.eq.s32.totalorder %s18, 0
      %p65 = por %p63, %p64
      %p66 = scmp.ne.s32.totalorder %s52, %s53
      %p67 = scmp.eq.s32.totalorder %s19, 1
      %p68 = por %p66, %p67
      %p70 = scmp.ne.s32.totalorder %s53, %s69
      %p71 = scmp.eq.s32.totalorder %s19, 0
      %p72 = por %p70, %p71
      %p73 = scmp.le.s32.totalorder 1, %s13
      %p74 = scmp.lt.s32.totalorder %s13, 3
      %p75 = pnand %p73, %p74
      %p76 = pneg %p75
      // Predicated region
      $region9: #{tpu_custom_call.1} parent=5 // pred_check
        _
      $region10: #{tpu_custom_call.1} parent=5 // pred_check_branch
        %78 = sbr.rel (%p75) target = $region12
      $region11: #{tpu_custom_call.1} parent=5 // pred_region
        %s79 = ssub.s32 %s13, 1
      $region12: #{tpu_custom_call.1} parent=5 // pred_fallthru
        _
      %p80 = scmp.lt.s32.totalorder %s13, 2
      // Predicated region
      $region13: #{tpu_custom_call.1} parent=5 // pred_check
        %p81 = pneg %p80
      $region14: #{tpu_custom_call.1} parent=5 // pred_check_branch
        %83 = sbr.rel (%p81) target = $region16
      $region15: #{tpu_custom_call.1} parent=5 // pred_region
        // Predicated region
        $region17: #{tpu_custom_call.1} parent=15 // pred_check
          %p84 = pneg %p33
        $region18: #{tpu_custom_call.1} parent=15 // pred_check_branch
          %86 = sbr.rel (%p84) target = $region20
        $region19: #{tpu_custom_call.1} parent=15 // pred_region
          %s87 = sand.u32 %s23, 1
          %s88 = scalar_lea.sflag [#allocation3], %s87
          %s89 = sand.u32 %s23, 1
          %s90 = smul.addr %s89, 8
          %s91 = scalar_lea.vmem [#allocation2], %s90
          %s93 = ssub.s32 128, 128
          %94 = vsyncadd %s88, %s93
          %s95 = smul.addr %s13, 128
          %s96 = scalar_lea.hbm %s0, %s95
          %s98 = sshll.u32 %s91, 4
          %s99 = int_to_ptr.vmem [resolvable:$true] %s98
          %101 = dma.hbm_to_vmem [thread:$0]  %s96, 128, %s99, %s88
        $region20: #{tpu_custom_call.1} parent=15 // pred_fallthru
          _
      $region16: #{tpu_custom_call.1} parent=5 // pred_fallthru
        _
      %p102 = scmp.le.s32.totalorder 1, %s13
      %p103 = scmp.lt.s32.totalorder %s13, 3
      %p104 = pnand %p102, %p103
      %p105 = pneg %p104
      // Predicated region
      $region21: #{tpu_custom_call.1} parent=5 // pred_check
        _
      $region22: #{tpu_custom_call.1} parent=5 // pred_check_branch
        %107 = sbr.rel (%p104) target = $region24
      $region23: #{tpu_custom_call.1} parent=5 // pred_region
        %s108 = ssub.s32 %s13, 1
        %s109 = sand.u32 %s26, 1
        %s110 = scalar_lea.sflag [#allocation3], %s109
        %s111 = sand.u32 %s26, 1
        %s112 = smul.addr %s111, 8
        %s113 = scalar_lea.vmem [#allocation2], %s112
        // Predicated region
        $region25: #{tpu_custom_call.1} parent=23 // pred_check
          %p114 = pneg %p39
        $region26: #{tpu_custom_call.1} parent=23 // pred_check_branch
          %116 = sbr.rel (%p114) target = $region28
        $region27: #{tpu_custom_call.1} parent=23 // pred_region
          %117 = dma.done %s110, 128
        $region28: #{tpu_custom_call.1} parent=23 // pred_fallthru
          _
        %s118 = sand.u32 %s26, 1
        %s119 = scalar_lea.sflag [#allocation3], %s118
        %s120 = sand.u32 %s26, 1
        %s121 = smul.addr %s120, 8
        %s122 = scalar_lea.vmem [#allocation2], %s121
        %p123 = pneg %p39
        %p124 = pneg %p36
        %p125 = pneg %p65
        %p126 = pneg %p62
        %s127 = sand.u32 %s52, 1
        %s128 = scalar_lea.sflag [#allocation4], %s127
        %s129 = sand.u32 %s52, 1
        %s130 = smul.addr %s129, 8
        %s131 = scalar_lea.vmem [#allocation5], %s130
        %v132 = vld [vmem:[%s113] sm:$0xff]
        %v133 = vmul.f32 %v132, %v132
        %134 = vadd.xlane.f32.xlu0 %v133
        %v135 = vpop.xlane.xlu0 %134
        %v136 = vmax.f32 %v135, 1e-10
        %v137 = vrsqrt.pop %v136
        %v138 = vmul.f32 %v136, %v137
        %v139 = vmin.f32 %v138, 0.99999
        %v140 = vadd.f32 %v139, 1.0
        %v141 = vsub.f32 1.0, %v139
        %v142 = vrcp.pop %v141
        %v143 = vmul.f32 %v140, %v142
        %v144 = vlog2.pop %v143
        %v145 = vmul.f32 %v144, 0.6931472
        %v146 = vmul.f32 %v145, 0.5
        %v147 = vmul.f32 %v146, %v137
        %v148 = vmul.f32 %v132, %v147
        %149 = vst [vmem:[%s131] sm:$0xff] %v148
        %s150 = sand.u32 %s52, 1
        %s151 = scalar_lea.sflag [#allocation4], %s150
        %s152 = sand.u32 %s52, 1
        %s153 = smul.addr %s152, 8
        %s154 = scalar_lea.vmem [#allocation5], %s153
        // Predicated region
        $region29: #{tpu_custom_call.1} parent=23 // pred_check
          %p155 = pneg %p62
        $region30: #{tpu_custom_call.1} parent=23 // pred_check_branch
          %157 = sbr.rel (%p155) target = $region32
        $region31: #{tpu_custom_call.1} parent=23 // pred_region
          %s159 = ssub.s32 128, 128
          %160 = vsyncadd %s151, %s159
          %s161 = smul.addr %s18, 128
          %s162 = scalar_lea.hbm %s1, %s161
          %s164 = sshll.u32 %s154, 4
          %s165 = int_to_ptr.vmem [resolvable:$true] %s164
          %167 = dma.vmem_to_hbm [thread:$0]  %s165, 128, %s162, %s151
        $region32: #{tpu_custom_call.1} parent=23 // pred_fallthru
          _
      $region24: #{tpu_custom_call.1} parent=5 // pred_fallthru
        _
      %p168 = scmp.le.s32.totalorder 2, %s13
      // Predicated region
      $region33: #{tpu_custom_call.1} parent=5 // pred_check
        %p169 = pneg %p168
      $region34: #{tpu_custom_call.1} parent=5 // pred_check_branch
        %171 = sbr.rel (%p169) target = $region36
      $region35: #{tpu_custom_call.1} parent=5 // pred_region
        %s172 = ssub.s32 %s13, 2
        // Predicated region
        $region37: #{tpu_custom_call.1} parent=35 // pred_check
          %p173 = pneg %p68
        $region38: #{tpu_custom_call.1} parent=35 // pred_check_branch
          %175 = sbr.rel (%p173) target = $region40
        $region39: #{tpu_custom_call.1} parent=35 // pred_region
          %s176 = sand.u32 %s53, 1
          %s177 = scalar_lea.sflag [#allocation4], %s176
          %s178 = sand.u32 %s53, 1
          %s179 = smul.addr %s178, 8
          %s180 = scalar_lea.vmem [#allocation5], %s179
          %181 = dma.done %s177, 128
        $region40: #{tpu_custom_call.1} parent=35 // pred_fallthru
          _
      $region36: #{tpu_custom_call.1} parent=5 // pred_fallthru
        _
    $region6: #{tpu_custom_call.1} parent=1 // loop_footer
      %s17 = sadd.s32 1, %s13
    $region7: #{tpu_custom_call.1} parent=1 // loop_footer_branch
      %12 = sbr.rel target = $region3
    $region8: #{tpu_custom_call.1} parent=1 // loop_exit
      _
    %182 = vsyncpa [#allocation3], 1
    %s183 = scalar_lea.sflag [#allocation3], 1
    %184 = vsyncpa %s183, 1
    %185 = vsyncpa [#allocation4], 1
    %s186 = scalar_lea.sflag [#allocation4], 1
    %187 = vsyncpa %s186, 1

</llo_original>
